<compile_context>
chip_gen: v7x
topology: tpu7x:2x2x1
jax: 0.10.0
libtpu: 0.0.40
codegen_flags: <defaults>
</compile_context>

<pallas_src>
import functools

import jax
import jax.numpy as jnp
from jax.experimental import pallas as pl
from jax.experimental.pallas import tpu as pltpu


def _round_up(x, m):
    return (x + m - 1) // m * m


# ----------------------------- Pallas kernels ------------------------------ #

def conv_relu_stats_kernel(w_ref, p_ref, b_ref, y_ref, sum_ref, ssq_ref,
                           sum_acc, ssq_acc, *, valid_cols, tn):
    """Fused conv(as matmul) + bias + ReLU + per-channel batch statistics.

    Shapes (per grid step): w (Cout_p, K_p) bf16, p (1, K_p, tn) bf16,
    b (Cout_p, 1) f32, y out (1, Cout_p, tn) f32, stats (Cout_p, 1) f32.
    """
    n = pl.program_id(0)
    j = pl.program_id(1)

    @pl.when((n == 0) & (j == 0))
    def _init():
        sum_acc[...] = jnp.zeros_like(sum_acc)
        ssq_acc[...] = jnp.zeros_like(ssq_acc)

    # MXU: bf16 x bf16 -> f32 accumulation; spatial axis on lanes (lane-dense).
    acc = jnp.dot(w_ref[...], p_ref[0], preferred_element_type=jnp.float32)
    y = jnp.maximum(acc + b_ref[...], 0.0)          # f32 epilogue
    y_ref[0] = y

    last_j = j == pl.num_programs(1) - 1

    # Only the last spatial tile of each image can contain padded columns.
    @pl.when(jnp.logical_not(last_j))
    def _acc_full():
        sum_acc[...] += jnp.sum(y, axis=1, keepdims=True)
        ssq_acc[...] += jnp.sum(y * y, axis=1, keepdims=True)

    @pl.when(last_j)
    def _acc_masked():
        lane = jax.lax.broadcasted_iota(jnp.int32, y.shape, 1)
        ym = jnp.where(j * tn + lane < valid_cols, y, 0.0)
        sum_acc[...] += jnp.sum(ym, axis=1, keepdims=True)
        ssq_acc[...] += jnp.sum(ym * ym, axis=1, keepdims=True)

    @pl.when((n == pl.num_programs(0) - 1) & last_j)
    def _flush():
        sum_ref[...] = sum_acc[...]
        ssq_ref[...] = ssq_acc[...]


def bn_kernel(y_ref, sum_ref, ssq_ref, gamma_ref, beta_ref, o_ref, *, count, eps):
    """BatchNorm2d (training mode): normalize with biased batch variance + affine."""
    inv_count = 1.0 / count
    mean = sum_ref[...] * inv_count                             # (Cout_p, 1)
    # clamp guards against tiny negative values from E[x^2] - mean^2 cancellation
    var = jnp.maximum(ssq_ref[...] * inv_count - mean * mean, 0.0)
    inv = jax.lax.rsqrt(var + eps)
    o_ref[0] = (y_ref[0] - mean) * (inv * gamma_ref[...]) + beta_ref[...]


# ------------------------------- wrapper ----------------------------------- #

def conv_block_forward(x, w, b, gamma, beta, *, pad, bn=True, eps=1e-5, tn=512):
    """x: (N, Cin, H, W) f32; w: (Cout, Cin, kh, kw); b/gamma/beta: (Cout,)."""
    N, Cin, H, W = x.shape
    Cout, _, kh, kw = w.shape
    Ho = H + 2 * pad - kh + 1
    Wo = W + 2 * pad - kw + 1
    S = Ho * Wo                       # flattened spatial positions per image
    K = kh * kw * Cin                 # contraction size

    tn = min(_round_up(tn, 128), _round_up(S, 128))   # lane-dense spatial tile
    S_p = _round_up(S, tn)
    K_p = _round_up(K, 16)            # bf16 sublane packing quantum
    Cout_p = _round_up(Cout, 8)
    num_j = S_p // tn
    grid = (N, num_j)

    # --- NCHW-native transposed im2col: (N, K, Ho*Wo), bf16, no transposes ---
    xp = jnp.pad(x, ((0, 0), (0, 0), (pad, pad), (pad, pad)))
    cols = [xp[:, :, dy:dy + Ho, dx:dx + Wo]
            for dy in range(kh) for dx in range(kw)]
    patches = jnp.concatenate(cols, axis=1).reshape(N, K, S).astype(jnp.bfloat16)
    patches = jnp.pad(patches, ((0, 0), (0, K_p - K), (0, S_p - S)))

    # weight -> (Cout_p, K_p), k ordered (dy, dx, cin) to match the concat above
    w2t = jnp.transpose(w, (0, 2, 3, 1)).reshape(Cout, K).astype(jnp.bfloat16)
    w2t = jnp.pad(w2t, ((0, Cout_p - Cout), (0, K_p - K)))
    b2 = jnp.pad(b.astype(jnp.float32).reshape(Cout, 1),
                 ((0, Cout_p - Cout), (0, 0)))

    # --- pass 1: conv + bias + ReLU + fused batch statistics ---
    y, ssum, ssq = pl.pallas_call(
        functools.partial(conv_relu_stats_kernel, valid_cols=S, tn=tn),
        out_shape=(jax.ShapeDtypeStruct((N, Cout_p, S_p), jnp.float32),
                   jax.ShapeDtypeStruct((Cout_p, 1), jnp.float32),
                   jax.ShapeDtypeStruct((Cout_p, 1), jnp.float32)),
        grid_spec=pltpu.PrefetchScalarGridSpec(
            num_scalar_prefetch=0, grid=grid,
            in_specs=[
                pl.BlockSpec((Cout_p, K_p), lambda n, j: (0, 0)),     # weights (resident)
                pl.BlockSpec((1, K_p, tn), lambda n, j: (n, 0, j)),   # patches (streamed)
                pl.BlockSpec((Cout_p, 1), lambda n, j: (0, 0)),       # bias
            ],
            out_specs=(
                pl.BlockSpec((1, Cout_p, tn), lambda n, j: (n, 0, j)),
                pl.BlockSpec((Cout_p, 1), lambda n, j: (0, 0)),
                pl.BlockSpec((Cout_p, 1), lambda n, j: (0, 0)),
            ),
            scratch_shapes=[pltpu.VMEM((Cout_p, 1), jnp.float32),
                            pltpu.VMEM((Cout_p, 1), jnp.float32)],
        ),
        compiler_params=pltpu.CompilerParams(
            dimension_semantics=("arbitrary", "arbitrary"),
            vmem_limit_bytes=32 * 1024 * 1024),
    )(w2t, patches, b2)

    if not bn:
        return y[:, :Cout, :S].reshape(N, Cout, Ho, Wo)

    g2 = jnp.pad(gamma.astype(jnp.float32).reshape(Cout, 1),
                 ((0, Cout_p - Cout), (0, 0)))
    bt2 = jnp.pad(beta.astype(jnp.float32).reshape(Cout, 1),
                  ((0, Cout_p - Cout), (0, 0)))

    # --- pass 2: normalize + affine, in place (y aliased to the output) ---
    yb = pl.pallas_call(
        functools.partial(bn_kernel, count=float(N * S), eps=float(eps)),
        out_shape=jax.ShapeDtypeStruct((N, Cout_p, S_p), jnp.float32),
        grid_spec=pltpu.PrefetchScalarGridSpec(
            num_scalar_prefetch=0, grid=grid,
            in_specs=[
                pl.BlockSpec((1, Cout_p, tn), lambda n, j: (n, 0, j)),
                pl.BlockSpec((Cout_p, 1), lambda n, j: (0, 0)),
                pl.BlockSpec((Cout_p, 1), lambda n, j: (0, 0)),
                pl.BlockSpec((Cout_p, 1), lambda n, j: (0, 0)),
                pl.BlockSpec((Cout_p, 1), lambda n, j: (0, 0)),
            ],
            out_specs=pl.BlockSpec((1, Cout_p, tn), lambda n, j: (n, 0, j)),
        ),
        input_output_aliases={0: 0},
        compiler_params=pltpu.CompilerParams(
            dimension_semantics=("parallel", "parallel"),
            vmem_limit_bytes=32 * 1024 * 1024),
    )(y, ssum, ssq, g2, bt2)

    # output is already channel-major per image -> plain slice + reshape, no transpose
    return yb[:, :Cout, :S].reshape(N, Cout, Ho, Wo)


# ------------------------------ reference ---------------------------------- #

def conv_block_ref(x, w, b, gamma, beta, *, pad, eps=1e-5):
    y = jax.lax.conv_general_dilated(
        x, w, (1, 1), [(pad, pad), (pad, pad)],
        dimension_numbers=("NCHW", "OIHW", "NCHW"))
    y = y + b.reshape(1, -1, 1, 1)
    y = jnp.maximum(y, 0.0)
    mean = y.mean(axis=(0, 2, 3), keepdims=True)
    var = ((y - mean) ** 2).mean(axis=(0, 2, 3), keepdims=True)   # biased (training mode)
    return (y - mean) * jax.lax.rsqrt(var + eps) * gamma.reshape(1, -1, 1, 1) \
        + beta.reshape(1, -1, 1, 1)


if __name__ == "__main__":
    # ConvBlock(in_channels=4, out_channels=8, kernel_size=3, pad=1, bias=True, bn=True)
    N, Cin, Cout, H, W, k, pad = 2, 4, 8, 16, 16, 3, 1

    key = jax.random.PRNGKey(0)
    kx, kw_, kb = jax.random.split(key, 3)
    x = jax.random.normal(kx, (N, Cin, H, W), dtype=jnp.float32)

    # deterministic params (PyTorch-style uniform init for conv; BN gamma=1, beta=0)
    bound = 1.0 / (Cin * k * k) ** 0.5
    w = jax.random.uniform(kw_, (Cout, Cin, k, k), jnp.float32, -bound, bound)
    b = jax.random.uniform(kb, (Cout,), jnp.float32, -bound, bound)
    gamma = jnp.ones((Cout,), jnp.float32)
    beta = jnp.zeros((Cout,), jnp.float32)

    fwd = jax.jit(functools.partial(conv_block_forward, pad=pad, bn=True))
    out = jax.block_until_ready(fwd(x, w, b, gamma, beta))
    assert out.shape == (N, Cout, H, W)

    # The kernel's matmul runs on bf16-quantized operands (f32 accumulation), so
    # compare against a reference built from the same quantized operands; this
    # isolates kernel correctness from the intended bf16 quantization error.
    xq = x.astype(jnp.bfloat16).astype(jnp.float32)
    wq = w.astype(jnp.bfloat16).astype(jnp.float32)
    ref = conv_block_ref(xq, wq, b, gamma, beta, pad=pad)

    max_err = float(jnp.abs(out - ref).max())
    assert jnp.allclose(out, ref, rtol=1e-3, atol=1e-3), max_err

    print("KERNEL_OK")
</pallas_src>

<mosaic_0001>
module attributes {stable_mosaic.version = 11 : i64} {
  func.func @conv_relu_stats_kernel(%arg0: i32, %arg1: i32, %arg2: memref<8x48xbf16, #tpu.memory_space<vmem>>, %arg3: memref<1x48x256xbf16, #tpu.memory_space<vmem>>, %arg4: memref<8x1xf32, #tpu.memory_space<vmem>>, %arg5: memref<1x8x256xf32, #tpu.memory_space<vmem>>, %arg6: memref<8x1xf32, #tpu.memory_space<vmem>>, %arg7: memref<8x1xf32, #tpu.memory_space<vmem>>, %arg8: memref<8x1xf32, #tpu.memory_space<vmem>>, %arg9: memref<8x1xf32, #tpu.memory_space<vmem>>) attributes {dimension_semantics = [#tpu.dimension_semantics<arbitrary>, #tpu.dimension_semantics<arbitrary>], iteration_bounds = array<i64: 2, 1>, scalar_prefetch = 0 : i64, scratch_operands = 2 : i64, tpu.core_type = #tpu.core_type<tc>, window_params = [{pipeline_mode = #tpu.pipeline_mode<synchronous>, transform_indices = @transform_0, window_bounds = array<i64: 8, 48>}, {transform_indices = @transform_1, window_bounds = array<i64: 1, 48, 256>}, {pipeline_mode = #tpu.pipeline_mode<synchronous>, transform_indices = @transform_2, window_bounds = array<i64: 8, 1>}, {transform_indices = @transform_3, window_bounds = array<i64: 1, 8, 256>}, {pipeline_mode = #tpu.pipeline_mode<synchronous>, transform_indices = @transform_4, window_bounds = array<i64: 8, 1>}, {pipeline_mode = #tpu.pipeline_mode<synchronous>, transform_indices = @transform_5, window_bounds = array<i64: 8, 1>}]} {
    %c0_i32 = arith.constant 0 : i32
    %0 = arith.cmpi eq, %arg0, %c0_i32 : i32
    %c0_i32_0 = arith.constant 0 : i32
    %1 = arith.cmpi eq, %arg1, %c0_i32_0 : i32
    %2 = arith.andi %0, %1 : i1
    %3 = arith.extui %2 : i1 to i32
    %c0_i32_1 = arith.constant 0 : i32
    %4 = arith.cmpi ne, %3, %c0_i32_1 : i32
    scf.if %4 {
      %cst_16 = arith.constant 0.000000e+00 : f32
      %27 = vector.broadcast %cst_16 : f32 to vector<8x1xf32>
      %c0_17 = arith.constant 0 : index
      %c0_18 = arith.constant 0 : index
      %28 = vector.load %arg8[%c0_17, %c0_18] : memref<8x1xf32, #tpu.memory_space<vmem>>, vector<8x1xf32>
      tpu.vector_store %arg8[%c0_17, %c0_18], %27 {strides = array<i32>} : memref<8x1xf32, #tpu.memory_space<vmem>>, vector<8x1xf32>,
      %cst_19 = arith.constant 0.000000e+00 : f32
      %29 = vector.broadcast %cst_19 : f32 to vector<8x1xf32>
      %c0_20 = arith.constant 0 : index
      %c0_21 = arith.constant 0 : index
      %30 = vector.load %arg9[%c0_20, %c0_21] : memref<8x1xf32, #tpu.memory_space<vmem>>, vector<8x1xf32>
      tpu.vector_store %arg9[%c0_20, %c0_21], %29 {strides = array<i32>} : memref<8x1xf32, #tpu.memory_space<vmem>>, vector<8x1xf32>,
    } else {
    }
    %c0 = arith.constant 0 : index
    %c0_2 = arith.constant 0 : index
    %5 = vector.load %arg2[%c0, %c0_2] : memref<8x48xbf16, #tpu.memory_space<vmem>>, vector<8x48xbf16>
    %c0_3 = arith.constant 0 : index
    %c0_4 = arith.constant 0 : index
    %c0_5 = arith.constant 0 : index
    %6 = vector.load %arg3[%c0_3, %c0_4, %c0_5] : memref<1x48x256xbf16, #tpu.memory_space<vmem>>, vector<1x48x256xbf16>
    %7 = vector.shape_cast %6 : vector<1x48x256xbf16> to vector<48x256xbf16>
    %cst = arith.constant dense<0.000000e+00> : vector<8x256xf32>
    %8 = tpu.matmul %5, %7, %cst {dimension_numbers = #tpu.dot_dimension_numbers<[1], [0], [0], [1], [0, 0, 1, 1], [], []>} : vector<8x48xbf16>, vector<48x256xbf16>, vector<8x256xf32> -> vector<8x256xf32>
    %c0_6 = arith.constant 0 : index
    %c0_7 = arith.constant 0 : index
    %9 = vector.load %arg4[%c0_6, %c0_7] : memref<8x1xf32, #tpu.memory_space<vmem>>, vector<8x1xf32>
    %10 = vector.broadcast %9 : vector<8x1xf32> to vector<8x256xf32>
    %11 = arith.addf %8, %10 : vector<8x256xf32>
    %cst_8 = arith.constant 0.000000e+00 : f32
    %12 = vector.broadcast %cst_8 : f32 to vector<8x256xf32>
    %13 = arith.maximumf %11, %12 : vector<8x256xf32>
    %c0_9 = arith.constant 0 : index
    %c0_10 = arith.constant 0 : index
    %c0_11 = arith.constant 0 : index
    %14 = vector.load %arg5[%c0_9, %c0_10, %c0_11] : memref<1x8x256xf32, #tpu.memory_space<vmem>>, vector<1x8x256xf32>
    %15 = vector.shape_cast %14 : vector<1x8x256xf32> to vector<8x256xf32>
    %16 = vector.shape_cast %13 : vector<8x256xf32> to vector<1x8x256xf32>
    tpu.vector_store %arg5[%c0_9, %c0_10, %c0_11], %16 {strides = array<i32>} : memref<1x8x256xf32, #tpu.memory_space<vmem>>, vector<1x8x256xf32>,
    %c0_i32_12 = arith.constant 0 : i32
    %17 = arith.cmpi eq, %arg1, %c0_i32_12 : i32
    %true = arith.constant true
    %18 = arith.xori %17, %true : i1
    %19 = arith.extui %18 : i1 to i32
    %c0_i32_13 = arith.constant 0 : i32
    %20 = arith.cmpi ne, %19, %c0_i32_13 : i32
    scf.if %20 {
      %c0_16 = arith.constant 0 : index
      %c0_17 = arith.constant 0 : index
      %27 = vector.load %arg8[%c0_16, %c0_17] : memref<8x1xf32, #tpu.memory_space<vmem>>, vector<8x1xf32>
      %cst_18 = arith.constant dense<0.000000e+00> : vector<8xf32>
      %28 = vector.multi_reduction <add>, %13, %cst_18 [1] : vector<8x256xf32> to vector<8xf32>
      %29 = vector.shape_cast %28 : vector<8xf32> to vector<8x1xf32>
      %30 = arith.addf %27, %29 : vector<8x1xf32>
      %c0_19 = arith.constant 0 : index
      %c0_20 = arith.constant 0 : index
      %31 = vector.load %arg8[%c0_19, %c0_20] : memref<8x1xf32, #tpu.memory_space<vmem>>, vector<8x1xf32>
      tpu.vector_store %arg8[%c0_19, %c0_20], %30 {strides = array<i32>} : memref<8x1xf32, #tpu.memory_space<vmem>>, vector<8x1xf32>,
      %c0_21 = arith.constant 0 : index
      %c0_22 = arith.constant 0 : index
      %32 = vector.load %arg9[%c0_21, %c0_22] : memref<8x1xf32, #tpu.memory_space<vmem>>, vector<8x1xf32>
      %33 = arith.mulf %13, %13 : vector<8x256xf32>
      %cst_23 = arith.constant dense<0.000000e+00> : vector<8xf32>
      %34 = vector.multi_reduction <add>, %33, %cst_23 [1] : vector<8x256xf32> to vector<8xf32>
      %35 = vector.shape_cast %34 : vector<8xf32> to vector<8x1xf32>
      %36 = arith.addf %32, %35 : vector<8x1xf32>
      %c0_24 = arith.constant 0 : index
      %c0_25 = arith.constant 0 : index
      %37 = vector.load %arg9[%c0_24, %c0_25] : memref<8x1xf32, #tpu.memory_space<vmem>>, vector<8x1xf32>
      tpu.vector_store %arg9[%c0_24, %c0_25], %36 {strides = array<i32>} : memref<8x1xf32, #tpu.memory_space<vmem>>, vector<8x1xf32>,
    } else {
    }
    %21 = arith.extui %17 : i1 to i32
    %c0_i32_14 = arith.constant 0 : i32
    %22 = arith.cmpi ne, %21, %c0_i32_14 : i32
    scf.if %22 {
      %27 = tpu.iota {dimensions = array<i32: 1>} : vector<8x256xi32>
      %c256_i32 = arith.constant 256 : i32
      %28 = arith.muli %arg1, %c256_i32 : i32
      %29 = vector.broadcast %28 : i32 to vector<8x256xi32>
      %30 = arith.addi %29, %27 : vector<8x256xi32>
      %c256_i32_16 = arith.constant 256 : i32
      %31 = vector.broadcast %c256_i32_16 : i32 to vector<8x256xi32>
      %32 = arith.cmpi slt, %30, %31 : vector<8x256xi32>
      %cst_17 = arith.constant 0.000000e+00 : f32
      %33 = vector.broadcast %cst_17 : f32 to vector<8x256xf32>
      %34 = arith.select %32, %13, %33 : vector<8x256xi1>, vector<8x256xf32>
      %c0_18 = arith.constant 0 : index
      %c0_19 = arith.constant 0 : index
      %35 = vector.load %arg8[%c0_18, %c0_19] : memref<8x1xf32, #tpu.memory_space<vmem>>, vector<8x1xf32>
      %cst_20 = arith.constant dense<0.000000e+00> : vector<8xf32>
      %36 = vector.multi_reduction <add>, %34, %cst_20 [1] : vector<8x256xf32> to vector<8xf32>
      %37 = vector.shape_cast %36 : vector<8xf32> to vector<8x1xf32>
      %38 = arith.addf %35, %37 : vector<8x1xf32>
      %c0_21 = arith.constant 0 : index
      %c0_22 = arith.constant 0 : index
      %39 = vector.load %arg8[%c0_21, %c0_22] : memref<8x1xf32, #tpu.memory_space<vmem>>, vector<8x1xf32>
      tpu.vector_store %arg8[%c0_21, %c0_22], %38 {strides = array<i32>} : memref<8x1xf32, #tpu.memory_space<vmem>>, vector<8x1xf32>,
      %c0_23 = arith.constant 0 : index
      %c0_24 = arith.constant 0 : index
      %40 = vector.load %arg9[%c0_23, %c0_24] : memref<8x1xf32, #tpu.memory_space<vmem>>, vector<8x1xf32>
      %41 = arith.mulf %34, %34 : vector<8x256xf32>
      %cst_25 = arith.constant dense<0.000000e+00> : vector<8xf32>
      %42 = vector.multi_reduction <add>, %41, %cst_25 [1] : vector<8x256xf32> to vector<8xf32>
      %43 = vector.shape_cast %42 : vector<8xf32> to vector<8x1xf32>
      %44 = arith.addf %40, %43 : vector<8x1xf32>
      %c0_26 = arith.constant 0 : index
      %c0_27 = arith.constant 0 : index
      %45 = vector.load %arg9[%c0_26, %c0_27] : memref<8x1xf32, #tpu.memory_space<vmem>>, vector<8x1xf32>
      tpu.vector_store %arg9[%c0_26, %c0_27], %44 {strides = array<i32>} : memref<8x1xf32, #tpu.memory_space<vmem>>, vector<8x1xf32>,
    } else {
    }
    %c1_i32 = arith.constant 1 : i32
    %23 = arith.cmpi eq, %arg0, %c1_i32 : i32
    %24 = arith.andi %23, %17 : i1
    %25 = arith.extui %24 : i1 to i32
    %c0_i32_15 = arith.constant 0 : i32
    %26 = arith.cmpi ne, %25, %c0_i32_15 : i32
    scf.if %26 {
      %c0_16 = arith.constant 0 : index
      %c0_17 = arith.constant 0 : index
      %27 = vector.load %arg8[%c0_16, %c0_17] : memref<8x1xf32, #tpu.memory_space<vmem>>, vector<8x1xf32>
      %c0_18 = arith.constant 0 : index
      %c0_19 = arith.constant 0 : index
      %28 = vector.load %arg6[%c0_18, %c0_19] : memref<8x1xf32, #tpu.memory_space<vmem>>, vector<8x1xf32>
      tpu.vector_store %arg6[%c0_18, %c0_19], %27 {strides = array<i32>} : memref<8x1xf32, #tpu.memory_space<vmem>>, vector<8x1xf32>,
      %c0_20 = arith.constant 0 : index
      %c0_21 = arith.constant 0 : index
      %29 = vector.load %arg9[%c0_20, %c0_21] : memref<8x1xf32, #tpu.memory_space<vmem>>, vector<8x1xf32>
      %c0_22 = arith.constant 0 : index
      %c0_23 = arith.constant 0 : index
      %30 = vector.load %arg7[%c0_22, %c0_23] : memref<8x1xf32, #tpu.memory_space<vmem>>, vector<8x1xf32>
      tpu.vector_store %arg7[%c0_22, %c0_23], %29 {strides = array<i32>} : memref<8x1xf32, #tpu.memory_space<vmem>>, vector<8x1xf32>,
    } else {
    }
    return
  }
  func.func @transform_0(%arg0: i32, %arg1: i32) -> (i32, i32) {
    %c0_i32 = arith.constant 0 : i32
    %c0_i32_0 = arith.constant 0 : i32
    %c0_i32_1 = arith.constant 0 : i32
    return %c0_i32, %c0_i32_0 : i32, i32
  }
  func.func @transform_1(%arg0: i32, %arg1: i32) -> (i32, i32, i32) {
    %c0_i32 = arith.constant 0 : i32
    %c0_i32_0 = arith.constant 0 : i32
    return %arg0, %c0_i32, %arg1 : i32, i32, i32
  }
  func.func @transform_2(%arg0: i32, %arg1: i32) -> (i32, i32) {
    %c0_i32 = arith.constant 0 : i32
    %c0_i32_0 = arith.constant 0 : i32
    %c0_i32_1 = arith.constant 0 : i32
    return %c0_i32, %c0_i32_0 : i32, i32
  }
  func.func @transform_3(%arg0: i32, %arg1: i32) -> (i32, i32, i32) {
    %c0_i32 = arith.constant 0 : i32
    %c0_i32_0 = arith.constant 0 : i32
    return %arg0, %c0_i32, %arg1 : i32, i32, i32
  }
  func.func @transform_4(%arg0: i32, %arg1: i32) -> (i32, i32) {
    %c0_i32 = arith.constant 0 : i32
    %c0_i32_0 = arith.constant 0 : i32
    %c0_i32_1 = arith.constant 0 : i32
    return %c0_i32, %c0_i32_0 : i32, i32
  }
  func.func @transform_5(%arg0: i32, %arg1: i32) -> (i32, i32) {
    %c0_i32 = arith.constant 0 : i32
    %c0_i32_0 = arith.constant 0 : i32
    %c0_i32_1 = arith.constant 0 : i32
    return %c0_i32, %c0_i32_0 : i32, i32
  }
}

module attributes {stable_mosaic.version = 11 : i64} {
  func.func @bn_kernel(%arg0: i32, %arg1: i32, %arg2: memref<1x8x256xf32, #tpu.memory_space<vmem>>, %arg3: memref<8x1xf32, #tpu.memory_space<vmem>>, %arg4: memref<8x1xf32, #tpu.memory_space<vmem>>, %arg5: memref<8x1xf32, #tpu.memory_space<vmem>>, %arg6: memref<8x1xf32, #tpu.memory_space<vmem>>, %arg7: memref<1x8x256xf32, #tpu.memory_space<vmem>>) attributes {dimension_semantics = [#tpu.dimension_semantics<parallel>, #tpu.dimension_semantics<parallel>], iteration_bounds = array<i64: 2, 1>, scalar_prefetch = 0 : i64, scratch_operands = 0 : i64, tpu.core_type = #tpu.core_type<tc>, window_params = [{transform_indices = @transform_0, window_bounds = array<i64: 1, 8, 256>}, {pipeline_mode = #tpu.pipeline_mode<synchronous>, transform_indices = @transform_1, window_bounds = array<i64: 8, 1>}, {pipeline_mode = #tpu.pipeline_mode<synchronous>, transform_indices = @transform_2, window_bounds = array<i64: 8, 1>}, {pipeline_mode = #tpu.pipeline_mode<synchronous>, transform_indices = @transform_3, window_bounds = array<i64: 8, 1>}, {pipeline_mode = #tpu.pipeline_mode<synchronous>, transform_indices = @transform_4, window_bounds = array<i64: 8, 1>}, {transform_indices = @transform_5, window_bounds = array<i64: 1, 8, 256>}]} {
    %c0 = arith.constant 0 : index
    %c0_0 = arith.constant 0 : index
    %0 = vector.load %arg3[%c0, %c0_0] : memref<8x1xf32, #tpu.memory_space<vmem>>, vector<8x1xf32>
    %cst = arith.constant 0.001953125 : f32
    %1 = vector.broadcast %cst : f32 to vector<8x1xf32>
    %2 = arith.mulf %0, %1 : vector<8x1xf32>
    %c0_1 = arith.constant 0 : index
    %c0_2 = arith.constant 0 : index
    %3 = vector.load %arg4[%c0_1, %c0_2] : memref<8x1xf32, #tpu.memory_space<vmem>>, vector<8x1xf32>
    %cst_3 = arith.constant 0.001953125 : f32
    %4 = vector.broadcast %cst_3 : f32 to vector<8x1xf32>
    %5 = arith.mulf %3, %4 : vector<8x1xf32>
    %6 = arith.mulf %2, %2 : vector<8x1xf32>
    %7 = arith.subf %5, %6 : vector<8x1xf32>
    %cst_4 = arith.constant 0.000000e+00 : f32
    %8 = vector.broadcast %cst_4 : f32 to vector<8x1xf32>
    %9 = arith.maximumf %7, %8 : vector<8x1xf32>
    %cst_5 = arith.constant 9.99999974E-6 : f32
    %10 = vector.broadcast %cst_5 : f32 to vector<8x1xf32>
    %11 = arith.addf %9, %10 : vector<8x1xf32>
    %12 = math.rsqrt %11 : vector<8x1xf32>
    %c0_6 = arith.constant 0 : index
    %c0_7 = arith.constant 0 : index
    %c0_8 = arith.constant 0 : index
    %13 = vector.load %arg2[%c0_6, %c0_7, %c0_8] : memref<1x8x256xf32, #tpu.memory_space<vmem>>, vector<1x8x256xf32>
    %14 = vector.shape_cast %13 : vector<1x8x256xf32> to vector<8x256xf32>
    %15 = vector.broadcast %2 : vector<8x1xf32> to vector<8x256xf32>
    %16 = arith.subf %14, %15 : vector<8x256xf32>
    %c0_9 = arith.constant 0 : index
    %c0_10 = arith.constant 0 : index
    %17 = vector.load %arg5[%c0_9, %c0_10] : memref<8x1xf32, #tpu.memory_space<vmem>>, vector<8x1xf32>
    %18 = arith.mulf %12, %17 : vector<8x1xf32>
    %19 = vector.broadcast %18 : vector<8x1xf32> to vector<8x256xf32>
    %20 = arith.mulf %16, %19 : vector<8x256xf32>
    %c0_11 = arith.constant 0 : index
    %c0_12 = arith.constant 0 : index
    %21 = vector.load %arg6[%c0_11, %c0_12] : memref<8x1xf32, #tpu.memory_space<vmem>>, vector<8x1xf32>
    %22 = vector.broadcast %21 : vector<8x1xf32> to vector<8x256xf32>
    %23 = arith.addf %20, %22 : vector<8x256xf32>
    %c0_13 = arith.constant 0 : index
    %c0_14 = arith.constant 0 : index
    %c0_15 = arith.constant 0 : index
    %24 = vector.load %arg7[%c0_13, %c0_14, %c0_15] : memref<1x8x256xf32, #tpu.memory_space<vmem>>, vector<1x8x256xf32>
    %25 = vector.shape_cast %24 : vector<1x8x256xf32> to vector<8x256xf32>
    %26 = vector.shape_cast %23 : vector<8x256xf32> to vector<1x8x256xf32>
    tpu.vector_store %arg7[%c0_13, %c0_14, %c0_15], %26 {strides = array<i32>} : memref<1x8x256xf32, #tpu.memory_space<vmem>>, vector<1x8x256xf32>,
    return
  }
  func.func @transform_0(%arg0: i32, %arg1: i32) -> (i32, i32, i32) {
    %c0_i32 = arith.constant 0 : i32
    %c0_i32_0 = arith.constant 0 : i32
    return %arg0, %c0_i32, %arg1 : i32, i32, i32
  }
  func.func @transform_1(%arg0: i32, %arg1: i32) -> (i32, i32) {
    %c0_i32 = arith.constant 0 : i32
    %c0_i32_0 = arith.constant 0 : i32
    %c0_i32_1 = arith.constant 0 : i32
    return %c0_i32, %c0_i32_0 : i32, i32
  }
  func.func @transform_2(%arg0: i32, %arg1: i32) -> (i32, i32) {
    %c0_i32 = arith.constant 0 : i32
    %c0_i32_0 = arith.constant 0 : i32
    %c0_i32_1 = arith.constant 0 : i32
    return %c0_i32, %c0_i32_0 : i32, i32
  }
  func.func @transform_3(%arg0: i32, %arg1: i32) -> (i32, i32) {
    %c0_i32 = arith.constant 0 : i32
    %c0_i32_0 = arith.constant 0 : i32
    %c0_i32_1 = arith.constant 0 : i32
    return %c0_i32, %c0_i32_0 : i32, i32
  }
  func.func @transform_4(%arg0: i32, %arg1: i32) -> (i32, i32) {
    %c0_i32 = arith.constant 0 : i32
    %c0_i32_0 = arith.constant 0 : i32
    %c0_i32_1 = arith.constant 0 : i32
    return %c0_i32, %c0_i32_0 : i32, i32
  }
  func.func @transform_5(%arg0: i32, %arg1: i32) -> (i32, i32, i32) {
    %c0_i32 = arith.constant 0 : i32
    %c0_i32_0 = arith.constant 0 : i32
    return %arg0, %c0_i32, %arg1 : i32, i32, i32
  }
}

</mosaic_0001>

<llo_original>
// kernel: conv_block_forward.3
$region0: #{conv_block_forward.3}
  #allocation0 [shape = 'u32[]', space=smem, size = 0x4, offset = 0x4, fixed_abs, tag = 'smem constant byte address 0x4 - core index']
  #allocation1 [shape = 'u32[144,128]{1,0:T(1,128)}', space=vmem, size = 0x12000, scoped, tag = 'internal scratch']
  %s0 = inlined_call_operand.vmem [shape: f32[2,8,256], index: 0, kind: input, shape index: {}, may-alias: {0,5}]
  %s1 = inlined_call_operand.vmem [shape: f32[8,1], index: 1, kind: input, shape index: {}]
  %s2 = inlined_call_operand.vmem [shape: f32[8,1], index: 2, kind: input, shape index: {}]
  %s3 = inlined_call_operand.vmem [shape: f32[8,1], index: 3, kind: input, shape index: {}]
  %s4 = inlined_call_operand.vmem [shape: f32[8,1], index: 4, kind: input, shape index: {}]
  %s5 = inlined_call_operand.vmem [shape: f32[2,8,256], index: 5, kind: output, shape index: {}, may-alias: {0,5}]
  %s6 = sld [smem:[#allocation0]]
  $region53: #{conv_block_forward.3} parent=0
    _
  %s8 = ssub.s32 1, %s6
  %s9 = scalar_select 0, %s8, %s6
  loop: start=0, step=1, limit=4
  $region2: #{conv_block_forward.3} parent=0 // loop_pre_header
    _
  $region3: #{conv_block_forward.3} parent=0 // loop_header
    %s11 = sphi 0, %s15
    %p12 = scmp.ge.s32.totalorder %s11, 4
    %s18 = sphi 0, %s30
    %s19 = sphi 0, %s26
    %s20 = sphi 0, %s18
    %s21 = sphi 0, %s19
    %s22 = sphi 0, %s20
    %s23 = sphi 0, %s21
    %s35 = sphi 0, %s37
    %s38 = sphi 0, %s35
    %s39 = sphi 0, %s38
    %s55 = sphi 0, %s39
    %s59 = sphi 0, %s59
    %s61 = sphi 0, %s59
    %s62 = sphi 0, %s61
    %s76 = sphi 0, %s62
    %s80 = sphi 0, %s80
    %s82 = sphi 0, %s80
    %s83 = sphi 0, %s82
    %s97 = sphi 0, %s83
    %s101 = sphi 0, %s101
    %s103 = sphi 0, %s101
    %s104 = sphi 0, %s103
    %s118 = sphi 0, %s104
    %s122 = sphi 0, %s122
    %s124 = sphi 0, %s122
    %s125 = sphi 0, %s124
    %s139 = sphi 0, %s125
    %s147 = sphi 0, %s149
    %s150 = sphi 0, %s147
    %s151 = sphi 0, %s150
    %s167 = sphi 0, %s151
  $region4: #{conv_block_forward.3} parent=0 // loop_header_branch
    %14 = sbr.rel (%p12) target = $region8
  $region5: #{conv_block_forward.3} parent=0 // loop_body
    %s16 = ssub.s32 %s11, 1
    %s17 = ssub.s32 %s11, 2
    %s24 = sadd.s32 1, %s19
    %p25 = scmp.ge.s32.totalorder %s24, 1
    %s26 = scalar_select %p25, 0, %s24
    %s27 = sadd.s32 1, %s18
    %s28 = scalar_select %p25, %s27, %s18
    %p29 = scmp.ge.s32.totalorder %s28, 2
    %s30 = scalar_select %p29, 0, %s28
    %s31 = ssub.s32 %s18, %s30
    %s32 = ssub.s32 %s19, %s26
    %s33 = sor.u32 %s31, %s32
    %p34 = scmp.eq.s32.totalorder %s33, 0
    %s36 = sadd.s32 %s35, 1
    %s37 = scalar_select %p34, %s35, %s36
    %p40 = pneg %p34
    %p41 = scmp.eq.s32.totalorder %s11, 1
    %p42 = por %p40, %p41
    %p43 = scmp.ne.s32.totalorder %s35, %s38
    %p44 = scmp.eq.s32.totalorder %s11, 0
    %p45 = por %p43, %p44
    %p46 = scmp.ne.s32.totalorder %s35, %s38
    %p47 = scmp.eq.s32.totalorder %s16, 1
    %p48 = por %p46, %p47
    %p49 = scmp.ne.s32.totalorder %s38, %s39
    %p50 = scmp.eq.s32.totalorder %s16, 0
    %p51 = por %p49, %p50
    %p52 = scmp.ne.s32.totalorder %s38, %s39
    %p53 = scmp.eq.s32.totalorder %s17, 1
    %p54 = por %p52, %p53
    %p56 = scmp.ne.s32.totalorder %s39, %s55
    %p57 = scmp.eq.s32.totalorder %s17, 0
    %p58 = por %p56, %p57
    %s60 = sadd.s32 %s59, 1
    %p63 = scmp.eq.s32.totalorder %s11, 1
    %p64 = scmp.ne.s32.totalorder %s59, %s61
    %p65 = scmp.eq.s32.totalorder %s11, 0
    %p66 = por %p64, %p65
    %p67 = scmp.ne.s32.totalorder %s59, %s61
    %p68 = scmp.eq.s32.totalorder %s16, 1
    %p69 = por %p67, %p68
    %p70 = scmp.ne.s32.totalorder %s61, %s62
    %p71 = scmp.eq.s32.totalorder %s16, 0
    %p72 = por %p70, %p71
    %p73 = scmp.ne.s32.totalorder %s61, %s62
    %p74 = scmp.eq.s32.totalorder %s17, 1
    %p75 = por %p73, %p74
    %p77 = scmp.ne.s32.totalorder %s62, %s76
    %p78 = scmp.eq.s32.totalorder %s17, 0
    %p79 = por %p77, %p78
    %s81 = sadd.s32 %s80, 1
    %p84 = scmp.eq.s32.totalorder %s11, 1
    %p85 = scmp.ne.s32.totalorder %s80, %s82
    %p86 = scmp.eq.s32.totalorder %s11, 0
    %p87 = por %p85, %p86
    %p88 = scmp.ne.s32.totalorder %s80, %s82
    %p89 = scmp.eq.s32.totalorder %s16, 1
    %p90 = por %p88, %p89
    %p91 = scmp.ne.s32.totalorder %s82, %s83
    %p92 = scmp.eq.s32.totalorder %s16, 0
    %p93 = por %p91, %p92
    %p94 = scmp.ne.s32.totalorder %s82, %s83
    %p95 = scmp.eq.s32.totalorder %s17, 1
    %p96 = por %p94, %p95
    %p98 = scmp.ne.s32.totalorder %s83, %s97
    %p99 = scmp.eq.s32.totalorder %s17, 0
    %p100 = por %p98, %p99
    %s102 = sadd.s32 %s101, 1
    %p105 = scmp.eq.s32.totalorder %s11, 1
    %p106 = scmp.ne.s32.totalorder %s101, %s103
    %p107 = scmp.eq.s32.totalorder %s11, 0
    %p108 = por %p106, %p107
    %p109 = scmp.ne.s32.totalorder %s101, %s103
    %p110 = scmp.eq.s32.totalorder %s16, 1
    %p111 = por %p109, %p110
    %p112 = scmp.ne.s32.totalorder %s103, %s104
    %p113 = scmp.eq.s32.totalorder %s16, 0
    %p114 = por %p112, %p113
    %p115 = scmp.ne.s32.totalorder %s103, %s104
    %p116 = scmp.eq.s32.totalorder %s17, 1
    %p117 = por %p115, %p116
    %p119 = scmp.ne.s32.totalorder %s104, %s118
    %p120 = scmp.eq.s32.totalorder %s17, 0
    %p121 = por %p119, %p120
    %s123 = sadd.s32 %s122, 1
    %p126 = scmp.eq.s32.totalorder %s11, 1
    %p127 = scmp.ne.s32.totalorder %s122, %s124
    %p128 = scmp.eq.s32.totalorder %s11, 0
    %p129 = por %p127, %p128
    %p130 = scmp.ne.s32.totalorder %s122, %s124
    %p131 = scmp.eq.s32.totalorder %s16, 1
    %p132 = por %p130, %p131
    %p133 = scmp.ne.s32.totalorder %s124, %s125
    %p134 = scmp.eq.s32.totalorder %s16, 0
    %p135 = por %p133, %p134
    %p136 = scmp.ne.s32.totalorder %s124, %s125
    %p137 = scmp.eq.s32.totalorder %s17, 1
    %p138 = por %p136, %p137
    %p140 = scmp.ne.s32.totalorder %s125, %s139
    %p141 = scmp.eq.s32.totalorder %s17, 0
    %p142 = por %p140, %p141
    %s143 = ssub.s32 %s18, %s30
    %s144 = ssub.s32 %s19, %s26
    %s145 = sor.u32 %s143, %s144
    %p146 = scmp.eq.s32.totalorder %s145, 0
    %s148 = sadd.s32 %s147, 1
    %s149 = scalar_select %p146, %s147, %s148
    %p152 = pneg %p146
    %p153 = scmp.eq.s32.totalorder %s11, 1
    %p154 = por %p152, %p153
    %p155 = scmp.ne.s32.totalorder %s147, %s150
    %p156 = scmp.eq.s32.totalorder %s11, 0
    %p157 = por %p155, %p156
    %p158 = scmp.ne.s32.totalorder %s147, %s150
    %p159 = scmp.eq.s32.totalorder %s16, 1
    %p160 = por %p158, %p159
    %p161 = scmp.ne.s32.totalorder %s150, %s151
    %p162 = scmp.eq.s32.totalorder %s16, 0
    %p163 = por %p161, %p162
    %p164 = scmp.ne.s32.totalorder %s150, %s151
    %p165 = scmp.eq.s32.totalorder %s17, 1
    %p166 = por %p164, %p165
    %p168 = scmp.ne.s32.totalorder %s151, %s167
    %p169 = scmp.eq.s32.totalorder %s17, 0
    %p170 = por %p168, %p169
    %p171 = scmp.le.s32.totalorder 1, %s11
    %p172 = scmp.lt.s32.totalorder %s11, 3
    %p173 = pnand %p171, %p172
    %p174 = pneg %p173
    // Predicated region
    $region9: #{conv_block_forward.3} parent=5 // pred_check
      _
    $region10: #{conv_block_forward.3} parent=5 // pred_check_branch
      %176 = sbr.rel (%p173) target = $region12
    $region11: #{conv_block_forward.3} parent=5 // pred_region
      %s177 = ssub.s32 %s11, 1
      // Predicated region
      $region13: #{conv_block_forward.3} parent=11 // pred_check
        %p178 = pneg %p72
      $region14: #{conv_block_forward.3} parent=11 // pred_check_branch
        %180 = sbr.rel (%p178) target = $region16
      $region15: #{conv_block_forward.3} parent=11 // pred_region
        _
      $region16: #{conv_block_forward.3} parent=11 // pred_fallthru
        _
      // Predicated region
      $region17: #{conv_block_forward.3} parent=11 // pred_check
        %p181 = pneg %p93
      $region18: #{conv_block_forward.3} parent=11 // pred_check_branch
        %183 = sbr.rel (%p181) target = $region20
      $region19: #{conv_block_forward.3} parent=11 // pred_region
        _
      $region20: #{conv_block_forward.3} parent=11 // pred_fallthru
        _
      // Predicated region
      $region21: #{conv_block_forward.3} parent=11 // pred_check
        %p184 = pneg %p114
      $region22: #{conv_block_forward.3} parent=11 // pred_check_branch
        %186 = sbr.rel (%p184) target = $region24
      $region23: #{conv_block_forward.3} parent=11 // pred_region
        _
      $region24: #{conv_block_forward.3} parent=11 // pred_fallthru
        _
      // Predicated region
      $region25: #{conv_block_forward.3} parent=11 // pred_check
        %p187 = pneg %p135
      $region26: #{conv_block_forward.3} parent=11 // pred_check_branch
        %189 = sbr.rel (%p187) target = $region28
      $region27: #{conv_block_forward.3} parent=11 // pred_region
        _
      $region28: #{conv_block_forward.3} parent=11 // pred_fallthru
        _
    $region12: #{conv_block_forward.3} parent=5 // pred_fallthru
      _
    %p190 = scmp.lt.s32.totalorder %s11, 2
    // Predicated region
    $region29: #{conv_block_forward.3} parent=5 // pred_check
      %p191 = pneg %p190
    $region30: #{conv_block_forward.3} parent=5 // pred_check_branch
      %193 = sbr.rel (%p191) target = $region32
    $region31: #{conv_block_forward.3} parent=5 // pred_region
      // Predicated region
      $region33: #{conv_block_forward.3} parent=31 // pred_check
        %p194 = pneg %p45
      $region34: #{conv_block_forward.3} parent=31 // pred_check_branch
        %196 = sbr.rel (%p194) target = $region36
      $region35: #{conv_block_forward.3} parent=31 // pred_region
        %s197 = smul.u32 2, %s19
        %p198 = scmp.lt.s32.totalorder %s18, 1
        %s199 = scalar_select %p198, %s18, 1
        %p200 = scmp.lt.s32.totalorder %s197, 1
        %s201 = scalar_select %p200, %s197, 1
        %s202 = smul.addr %s199, 2
        %s203 = sadd.s32 %s201, %s202
        %s204 = smul.addr %s203, 8
        %s205 = scalar_lea.vmem %s0, %s204
        %s206 = smul.u32 2, %s19
      $region36: #{conv_block_forward.3} parent=31 // pred_fallthru
        _
    $region32: #{conv_block_forward.3} parent=5 // pred_fallthru
      _
    %p207 = scmp.le.s32.totalorder 1, %s11
    %p208 = scmp.lt.s32.totalorder %s11, 3
    %p209 = pnand %p207, %p208
    %p210 = pneg %p209
    // Predicated region
    $region37: #{conv_block_forward.3} parent=5 // pred_check
      _
    $region38: #{conv_block_forward.3} parent=5 // pred_check_branch
      %212 = sbr.rel (%p209) target = $region40
    $region39: #{conv_block_forward.3} parent=5 // pred_region
      %s213 = ssub.s32 %s11, 1
      %s214 = smul.u32 2, %s21
      %p215 = scmp.lt.s32.totalorder %s20, 1
      %s216 = scalar_select %p215, %s20, 1
      %p217 = scmp.lt.s32.totalorder %s214, 1
      %s218 = scalar_select %p217, %s214, 1
      %s219 = smul.addr %s216, 2
      %s220 = sadd.s32 %s218, %s219
      %s221 = smul.addr %s220, 8
      %s222 = scalar_lea.vmem %s0, %s221
      %p223 = pneg %p51
      %p224 = pneg %p48
      %p225 = pneg %p72
      %p226 = pneg %p69
      %p227 = pneg %p93
      %p228 = pneg %p90
      %p229 = pneg %p114
      %p230 = pneg %p111
      %p231 = pneg %p135
      %p232 = pneg %p132
      %p233 = pneg %p163
      %p234 = pneg %p160
      %s235 = smul.u32 2, %s21
      %p236 = scmp.lt.s32.totalorder %s20, 1
      %s237 = scalar_select %p236, %s20, 1
      %p238 = scmp.lt.s32.totalorder %s235, 1
      %s239 = scalar_select %p238, %s235, 1
      %s240 = smul.addr %s237, 2
      %s241 = sadd.s32 %s239, %s240
      %s242 = smul.addr %s241, 8
      %s243 = scalar_lea.vmem %s5, %s242
      %s244 = smul.u32 2, %s21
      %p245 = scmp.lt.s32.totalorder %s20, 1
      %s246 = scalar_select %p245, %s20, 1
      %p247 = scmp.lt.s32.totalorder %s244, 1
      %s248 = scalar_select %p247, %s244, 1
      %s249 = smul.addr %s246, 2
      %s250 = sadd.s32 %s248, %s249
      %s251 = smul.addr %s250, 8
      %s252 = scalar_lea.vmem %s0, %s251
      %s253 = smul.u32 2, %s21
      %s254 = smul.u32 2, %s21
      %p255 = scmp.lt.s32.totalorder %s20, 1
      %s256 = scalar_select %p255, %s20, 1
      %p257 = scmp.lt.s32.totalorder %s254, 1
      %s258 = scalar_select %p257, %s254, 1
      %s259 = smul.addr %s256, 2
      %s260 = sadd.s32 %s258, %s259
      %s261 = smul.addr %s260, 8
      %s262 = scalar_lea.vmem %s5, %s261
      %s263 = smul.u32 2, %s21
      %v264 = vld [vmem:[%s1] sm:$0xff]
      %v265 = vmul.f32 %v264, 0.001953125
      %v266 = vld [vmem:[%s2] sm:$0xff]
      %v267 = vmul.f32 %v266, 0.001953125
      %v268 = vmul.f32 %v265, %v265
      %v269 = vsub.f32 %v267, %v268
      %v270 = vmax.f32 %v269, 0.0
      %v271 = vadd.f32 %v270, 1e-05
      %v272 = vrsqrt.pop %v271
      %v273 = vld [vmem:[%s252] sm:$0xff]
      %v274 = vld [vmem:[%s252 + $0x8] sm:$0xff]
      %276 = vset.pattern.permute.xlu0 0
      %277 = vperm.xlu0 %276, %v265
      %v278 = vpop.permute.xlu0 %277
      %v280 = vsub.f32 %v273, %v278
      %v281 = vsub.f32 %v274, %v278
      %v282 = vld [vmem:[%s3] sm:$0xff]
      %v283 = vmul.f32 %v272, %v282
      %285 = vset.pattern.permute.xlu0 0
      %286 = vperm.xlu0 %285, %v283
      %v287 = vpop.permute.xlu0 %286
      %v289 = vmul.f32 %v280, %v287
      %v290 = vmul.f32 %v281, %v287
      %v291 = vld [vmem:[%s4] sm:$0xff]
      %293 = vset.pattern.permute.xlu0 0
      %294 = vperm.xlu0 %293, %v291
      %v295 = vpop.permute.xlu0 %294
      %v297 = vadd.f32 %v289, %v295
      %v298 = vadd.f32 %v290, %v295
      %299 = vst [vmem:[%s262] sm:$0xff] %v297
      %300 = vst [vmem:[%s262 + $0x8] sm:$0xff] %v298
      %s301 = smul.u32 2, %s21
      %p302 = scmp.lt.s32.totalorder %s20, 1
      %s303 = scalar_select %p302, %s20, 1
      %p304 = scmp.lt.s32.totalorder %s301, 1
      %s305 = scalar_select %p304, %s301, 1
      %s306 = smul.addr %s303, 2
      %s307 = sadd.s32 %s305, %s306
      %s308 = smul.addr %s307, 8
      %s309 = scalar_lea.vmem %s5, %s308
      // Predicated region
      $region41: #{conv_block_forward.3} parent=39 // pred_check
        %p310 = pneg %p160
      $region42: #{conv_block_forward.3} parent=39 // pred_check_branch
        %312 = sbr.rel (%p310) target = $region44
      $region43: #{conv_block_forward.3} parent=39 // pred_region
        %s313 = smul.u32 2, %s21
      $region44: #{conv_block_forward.3} parent=39 // pred_fallthru
        _
    $region40: #{conv_block_forward.3} parent=5 // pred_fallthru
      _
    %p314 = scmp.le.s32.totalorder 2, %s11
    // Predicated region
    $region45: #{conv_block_forward.3} parent=5 // pred_check
      %p315 = pneg %p314
    $region46: #{conv_block_forward.3} parent=5 // pred_check_branch
      %317 = sbr.rel (%p315) target = $region48
    $region47: #{conv_block_forward.3} parent=5 // pred_region
      %s318 = ssub.s32 %s11, 2
      // Predicated region
      $region49: #{conv_block_forward.3} parent=47 // pred_check
        %p319 = pneg %p166
      $region50: #{conv_block_forward.3} parent=47 // pred_check_branch
        %321 = sbr.rel (%p319) target = $region52
      $region51: #{conv_block_forward.3} parent=47 // pred_region
        %s322 = smul.u32 2, %s23
        %p323 = scmp.lt.s32.totalorder %s22, 1
        %s324 = scalar_select %p323, %s22, 1
        %p325 = scmp.lt.s32.totalorder %s322, 1
        %s326 = scalar_select %p325, %s322, 1
        %s327 = smul.addr %s324, 2
        %s328 = sadd.s32 %s326, %s327
        %s329 = smul.addr %s328, 8
        %s330 = scalar_lea.vmem %s5, %s329
      $region52: #{conv_block_forward.3} parent=47 // pred_fallthru
        _
    $region48: #{conv_block_forward.3} parent=5 // pred_fallthru
      _
  $region6: #{conv_block_forward.3} parent=0 // loop_footer
    %s15 = sadd.s32 1, %s11
  $region7: #{conv_block_forward.3} parent=0 // loop_footer_branch
    %10 = sbr.rel target = $region3
  $region8: #{conv_block_forward.3} parent=0 // loop_exit
    _

// kernel: conv_block_forward.2
$region0: #{conv_block_forward.2}
  #allocation0 [shape = 'u32[]', space=smem, size = 0x4, offset = 0x4, fixed_abs, tag = 'smem constant byte address 0x4 - core index']
  #allocation1 [shape = 'u32[144,128]{1,0:T(1,128)}', space=vmem, size = 0x12000, scoped, tag = 'internal scratch']
  #allocation2 [shape = 'f32[8,1]{1,0:T(8,128)}', space=vmem, size = 0x1000, scoped, tag = 'scratch operand']
  #allocation3 [shape = 'f32[8,1]{1,0:T(8,128)}', space=vmem, size = 0x1000, scoped, tag = 'scratch operand']
  %s0 = inlined_call_operand.vmem [shape: bf16[8,48], index: 0, kind: input, shape index: {}]
  %s1 = inlined_call_operand.vmem [shape: bf16[2,48,256], index: 1, kind: input, shape index: {}]
  %s2 = inlined_call_operand.vmem [shape: f32[8,1], index: 2, kind: input, shape index: {}]
  %s3 = inlined_call_operand.vmem [shape: f32[2,8,256], index: 3, kind: output, shape index: {0}]
  %s4 = inlined_call_operand.vmem [shape: f32[8,1], index: 4, kind: output, shape index: {1}]
  %s5 = inlined_call_operand.vmem [shape: f32[8,1], index: 5, kind: output, shape index: {2}]
  %6 = xla_tuple %s3, %s4, %s5
  %s7 = sld [smem:[#allocation0]]
  $region77: #{conv_block_forward.2} parent=0
    _
  %s9 = ssub.s32 1, %s7
  %s10 = scalar_select 0, %s9, %s7
  loop: start=0, step=1, limit=4
  $region2: #{conv_block_forward.2} parent=0 // loop_pre_header
    _
  $region3: #{conv_block_forward.2} parent=0 // loop_header
    %s12 = sphi 0, %s16
    %p13 = scmp.ge.s32.totalorder %s12, 4
    %s19 = sphi 0, %s31
    %s20 = sphi 0, %s27
    %s21 = sphi 0, %s19
    %s22 = sphi 0, %s20
    %s23 = sphi 0, %s21
    %s24 = sphi 0, %s22
    %s32 = sphi 0, %s32
    %s34 = sphi 0, %s32
    %s35 = sphi 0, %s34
    %s49 = sphi 0, %s35
    %s57 = sphi 0, %s59
    %s60 = sphi 0, %s57
    %s61 = sphi 0, %s60
    %s77 = sphi 0, %s61
    %s81 = sphi 0, %s81
    %s83 = sphi 0, %s81
    %s84 = sphi 0, %s83
    %s98 = sphi 0, %s84
    %s106 = sphi 0, %s108
    %s109 = sphi 0, %s106
    %s110 = sphi 0, %s109
    %s126 = sphi 0, %s110
    %s130 = sphi 0, %s130
    %s132 = sphi 0, %s130
    %s133 = sphi 0, %s132
    %s147 = sphi 0, %s133
    %s151 = sphi 0, %s151
    %s153 = sphi 0, %s151
    %s154 = sphi 0, %s153
    %s168 = sphi 0, %s154
  $region4: #{conv_block_forward.2} parent=0 // loop_header_branch
    %15 = sbr.rel (%p13) target = $region8
  $region5: #{conv_block_forward.2} parent=0 // loop_body
    %s17 = ssub.s32 %s12, 1
    %s18 = ssub.s32 %s12, 2
    %s25 = sadd.s32 1, %s20
    %p26 = scmp.ge.s32.totalorder %s25, 1
    %s27 = scalar_select %p26, 0, %s25
    %s28 = sadd.s32 1, %s19
    %s29 = scalar_select %p26, %s28, %s19
    %p30 = scmp.ge.s32.totalorder %s29, 2
    %s31 = scalar_select %p30, 0, %s29
    %s33 = sadd.s32 %s32, 1
    %p36 = scmp.eq.s32.totalorder %s12, 1
    %p37 = scmp.ne.s32.totalorder %s32, %s34
    %p38 = scmp.eq.s32.totalorder %s12, 0
    %p39 = por %p37, %p38
    %p40 = scmp.ne.s32.totalorder %s32, %s34
    %p41 = scmp.eq.s32.totalorder %s17, 1
    %p42 = por %p40, %p41
    %p43 = scmp.ne.s32.totalorder %s34, %s35
    %p44 = scmp.eq.s32.totalorder %s17, 0
    %p45 = por %p43, %p44
    %p46 = scmp.ne.s32.totalorder %s34, %s35
    %p47 = scmp.eq.s32.totalorder %s18, 1
    %p48 = por %p46, %p47
    %p50 = scmp.ne.s32.totalorder %s35, %s49
    %p51 = scmp.eq.s32.totalorder %s18, 0
    %p52 = por %p50, %p51
    %s53 = ssub.s32 %s19, %s31
    %s54 = ssub.s32 %s20, %s27
    %s55 = sor.u32 %s53, %s54
    %p56 = scmp.eq.s32.totalorder %s55, 0
    %s58 = sadd.s32 %s57, 1
    %s59 = scalar_select %p56, %s57, %s58
    %p62 = pneg %p56
    %p63 = scmp.eq.s32.totalorder %s12, 1
    %p64 = por %p62, %p63
    %p65 = scmp.ne.s32.totalorder %s57, %s60
    %p66 = scmp.eq.s32.totalorder %s12, 0
    %p67 = por %p65, %p66
    %p68 = scmp.ne.s32.totalorder %s57, %s60
    %p69 = scmp.eq.s32.totalorder %s17, 1
    %p70 = por %p68, %p69
    %p71 = scmp.ne.s32.totalorder %s60, %s61
    %p72 = scmp.eq.s32.totalorder %s17, 0
    %p73 = por %p71, %p72
    %p74 = scmp.ne.s32.totalorder %s60, %s61
    %p75 = scmp.eq.s32.totalorder %s18, 1
    %p76 = por %p74, %p75
    %p78 = scmp.ne.s32.totalorder %s61, %s77
    %p79 = scmp.eq.s32.totalorder %s18, 0
    %p80 = por %p78, %p79
    %s82 = sadd.s32 %s81, 1
    %p85 = scmp.eq.s32.totalorder %s12, 1
    %p86 = scmp.ne.s32.totalorder %s81, %s83
    %p87 = scmp.eq.s32.totalorder %s12, 0
    %p88 = por %p86, %p87
    %p89 = scmp.ne.s32.totalorder %s81, %s83
    %p90 = scmp.eq.s32.totalorder %s17, 1
    %p91 = por %p89, %p90
    %p92 = scmp.ne.s32.totalorder %s83, %s84
    %p93 = scmp.eq.s32.totalorder %s17, 0
    %p94 = por %p92, %p93
    %p95 = scmp.ne.s32.totalorder %s83, %s84
    %p96 = scmp.eq.s32.totalorder %s18, 1
    %p97 = por %p95, %p96
    %p99 = scmp.ne.s32.totalorder %s84, %s98
    %p100 = scmp.eq.s32.totalorder %s18, 0
    %p101 = por %p99, %p100
    %s102 = ssub.s32 %s19, %s31
    %s103 = ssub.s32 %s20, %s27
    %s104 = sor.u32 %s102, %s103
    %p105 = scmp.eq.s32.totalorder %s104, 0
    %s107 = sadd.s32 %s106, 1
    %s108 = scalar_select %p105, %s106, %s107
    %p111 = pneg %p105
    %p112 = scmp.eq.s32.totalorder %s12, 1
    %p113 = por %p111, %p112
    %p114 = scmp.ne.s32.totalorder %s106, %s109
    %p115 = scmp.eq.s32.totalorder %s12, 0
    %p116 = por %p114, %p115
    %p117 = scmp.ne.s32.totalorder %s106, %s109
    %p118 = scmp.eq.s32.totalorder %s17, 1
    %p119 = por %p117, %p118
    %p120 = scmp.ne.s32.totalorder %s109, %s110
    %p121 = scmp.eq.s32.totalorder %s17, 0
    %p122 = por %p120, %p121
    %p123 = scmp.ne.s32.totalorder %s109, %s110
    %p124 = scmp.eq.s32.totalorder %s18, 1
    %p125 = por %p123, %p124
    %p127 = scmp.ne.s32.totalorder %s110, %s126
    %p128 = scmp.eq.s32.totalorder %s18, 0
    %p129 = por %p127, %p128
    %s131 = sadd.s32 %s130, 1
    %p134 = scmp.eq.s32.totalorder %s12, 1
    %p135 = scmp.ne.s32.totalorder %s130, %s132
    %p136 = scmp.eq.s32.totalorder %s12, 0
    %p137 = por %p135, %p136
    %p138 = scmp.ne.s32.totalorder %s130, %s132
    %p139 = scmp.eq.s32.totalorder %s17, 1
    %p140 = por %p138, %p139
    %p141 = scmp.ne.s32.totalorder %s132, %s133
    %p142 = scmp.eq.s32.totalorder %s17, 0
    %p143 = por %p141, %p142
    %p144 = scmp.ne.s32.totalorder %s132, %s133
    %p145 = scmp.eq.s32.totalorder %s18, 1
    %p146 = por %p144, %p145
    %p148 = scmp.ne.s32.totalorder %s133, %s147
    %p149 = scmp.eq.s32.totalorder %s18, 0
    %p150 = por %p148, %p149
    %s152 = sadd.s32 %s151, 1
    %p155 = scmp.eq.s32.totalorder %s12, 1
    %p156 = scmp.ne.s32.totalorder %s151, %s153
    %p157 = scmp.eq.s32.totalorder %s12, 0
    %p158 = por %p156, %p157
    %p159 = scmp.ne.s32.totalorder %s151, %s153
    %p160 = scmp.eq.s32.totalorder %s17, 1
    %p161 = por %p159, %p160
    %p162 = scmp.ne.s32.totalorder %s153, %s154
    %p163 = scmp.eq.s32.totalorder %s17, 0
    %p164 = por %p162, %p163
    %p165 = scmp.ne.s32.totalorder %s153, %s154
    %p166 = scmp.eq.s32.totalorder %s18, 1
    %p167 = por %p165, %p166
    %p169 = scmp.ne.s32.totalorder %s154, %s168
    %p170 = scmp.eq.s32.totalorder %s18, 0
    %p171 = por %p169, %p170
    %p172 = scmp.le.s32.totalorder 1, %s12
    %p173 = scmp.lt.s32.totalorder %s12, 3
    %p174 = pnand %p172, %p173
    %p175 = pneg %p174
    // Predicated region
    $region9: #{conv_block_forward.2} parent=5 // pred_check
      _
    $region10: #{conv_block_forward.2} parent=5 // pred_check_branch
      %177 = sbr.rel (%p174) target = $region12
    $region11: #{conv_block_forward.2} parent=5 // pred_region
      %s178 = ssub.s32 %s12, 1
      // Predicated region
      $region13: #{conv_block_forward.2} parent=11 // pred_check
        %p179 = pneg %p45
      $region14: #{conv_block_forward.2} parent=11 // pred_check_branch
        %181 = sbr.rel (%p179) target = $region16
      $region15: #{conv_block_forward.2} parent=11 // pred_region
        _
      $region16: #{conv_block_forward.2} parent=11 // pred_fallthru
        _
      // Predicated region
      $region17: #{conv_block_forward.2} parent=11 // pred_check
        %p182 = pneg %p94
      $region18: #{conv_block_forward.2} parent=11 // pred_check_branch
        %184 = sbr.rel (%p182) target = $region20
      $region19: #{conv_block_forward.2} parent=11 // pred_region
        _
      $region20: #{conv_block_forward.2} parent=11 // pred_fallthru
        _
    $region12: #{conv_block_forward.2} parent=5 // pred_fallthru
      _
    %p185 = scmp.lt.s32.totalorder %s12, 2
    // Predicated region
    $region21: #{conv_block_forward.2} parent=5 // pred_check
      %p186 = pneg %p185
    $region22: #{conv_block_forward.2} parent=5 // pred_check_branch
      %188 = sbr.rel (%p186) target = $region24
    $region23: #{conv_block_forward.2} parent=5 // pred_region
      // Predicated region
      $region25: #{conv_block_forward.2} parent=23 // pred_check
        %p189 = pneg %p67
      $region26: #{conv_block_forward.2} parent=23 // pred_check_branch
        %191 = sbr.rel (%p189) target = $region28
      $region27: #{conv_block_forward.2} parent=23 // pred_region
        %s192 = smul.u32 2, %s20
        %p193 = scmp.lt.s32.totalorder %s19, 1
        %s194 = scalar_select %p193, %s19, 1
        %p195 = scmp.lt.s32.totalorder %s192, 1
        %s196 = scalar_select %p195, %s192, 1
        %s197 = smul.addr %s194, 12
        %s198 = sadd.s32 %s196, %s197
        %s199 = smul.addr %s198, 4
        %s200 = scalar_lea.vmem %s1, %s199
        %s201 = smul.u32 2, %s20
      $region28: #{conv_block_forward.2} parent=23 // pred_fallthru
        _
    $region24: #{conv_block_forward.2} parent=5 // pred_fallthru
      _
    %p202 = scmp.le.s32.totalorder 1, %s12
    %p203 = scmp.lt.s32.totalorder %s12, 3
    %p204 = pnand %p202, %p203
    %p205 = pneg %p204
    // Predicated region
    $region29: #{conv_block_forward.2} parent=5 // pred_check
      _
    $region30: #{conv_block_forward.2} parent=5 // pred_check_branch
      %207 = sbr.rel (%p204) target = $region32
    $region31: #{conv_block_forward.2} parent=5 // pred_region
      %s208 = ssub.s32 %s12, 1
      %p209 = pneg %p45
      %p210 = pneg %p42
      %s211 = smul.u32 2, %s22
      %p212 = scmp.lt.s32.totalorder %s21, 1
      %s213 = scalar_select %p212, %s21, 1
      %p214 = scmp.lt.s32.totalorder %s211, 1
      %s215 = scalar_select %p214, %s211, 1
      %s216 = smul.addr %s213, 12
      %s217 = sadd.s32 %s215, %s216
      %s218 = smul.addr %s217, 4
      %s219 = scalar_lea.vmem %s1, %s218
      %p220 = pneg %p73
      %p221 = pneg %p70
      %p222 = pneg %p94
      %p223 = pneg %p91
      %p224 = pneg %p122
      %p225 = pneg %p119
      %s226 = smul.u32 2, %s22
      %p227 = scmp.lt.s32.totalorder %s21, 1
      %s228 = scalar_select %p227, %s21, 1
      %p229 = scmp.lt.s32.totalorder %s226, 1
      %s230 = scalar_select %p229, %s226, 1
      %s231 = smul.addr %s228, 2
      %s232 = sadd.s32 %s230, %s231
      %s233 = smul.addr %s232, 8
      %s234 = scalar_lea.vmem %s3, %s233
      %p235 = pneg %p143
      %p236 = pneg %p140
      %p237 = pneg %p164
      %p238 = pneg %p161
      %s239 = smul.u32 2, %s22
      %p240 = scmp.lt.s32.totalorder %s21, 1
      %s241 = scalar_select %p240, %s21, 1
      %p242 = scmp.lt.s32.totalorder %s239, 1
      %s243 = scalar_select %p242, %s239, 1
      %s244 = smul.addr %s241, 12
      %s245 = sadd.s32 %s243, %s244
      %s246 = smul.addr %s245, 4
      %s247 = scalar_lea.vmem %s1, %s246
      %s248 = smul.u32 2, %s22
      %s249 = smul.u32 2, %s22
      %p250 = scmp.lt.s32.totalorder %s21, 1
      %s251 = scalar_select %p250, %s21, 1
      %p252 = scmp.lt.s32.totalorder %s249, 1
      %s253 = scalar_select %p252, %s249, 1
      %s254 = smul.addr %s251, 2
      %s255 = sadd.s32 %s253, %s254
      %s256 = smul.addr %s255, 8
      %s257 = scalar_lea.vmem %s3, %s256
      %s258 = smul.u32 2, %s22
      %p260 = scmp.eq.s32.totalorder %s21, 0
      %p261 = scmp.eq.s32.totalorder %s22, 0
      %p262 = pnand %p260, %p261
      %p263 = pneg %p262
      // Predicated region
      $region33: #{conv_block_forward.2} parent=31 // pred_check
        _
      $region34: #{conv_block_forward.2} parent=31 // pred_check_branch
        %265 = sbr.rel (%p262) target = $region36
      $region35: #{conv_block_forward.2} parent=31 // pred_region
        %vm266 = vcmask 7168
        %267 = vst.msk [vmem:[#allocation2] sm:$0xff] %vm266, 0.0
        %268 = vst.msk [vmem:[#allocation3] sm:$0xff] %vm266, 0.0
      $region36: #{conv_block_forward.2} parent=31 // pred_fallthru
        _
      %v269 = vld [vmem:[%s0] sm:$0xf]
      %v270 = vld [vmem:[%s247] sm:$0xff]
      %v271 = vld [vmem:[%s247 + $0x8] sm:$0xff]
      %v272 = vld [vmem:[%s247 + $0x10] sm:$0xff]
      %v273 = vld [vmem:[%s247 + $0x18] sm:$0xff]
      %v274 = vld [vmem:[%s247 + $0x20] sm:$0xff]
      %v275 = vld [vmem:[%s247 + $0x28] sm:$0xff]
      %v276 = vld [vmem:[%s2] sm:$0xff]
      %278 = vset.pattern.permute.xlu0 0
      %279 = vperm.xlu0 %278, %v276
      %v280 = vpop.permute.xlu0 %279
      %v288 = vunpack.c.l.b16 %v270
      %v289 = vunpack.c.h.b16 %v270
      %v290 = vunpack.c.l.b16 %v271
      %v291 = vunpack.c.h.b16 %v271
      %v292 = vunpack.c.l.b16 %v272
      %v293 = vunpack.c.h.b16 %v272
      %v294 = vunpack.c.l.b16 %v273
      %v295 = vunpack.c.h.b16 %v273
      %v296 = vunpack.c.l.b16 %v274
      %v297 = vunpack.c.h.b16 %v274
      %v298 = vunpack.c.l.b16 %v275
      %v299 = vunpack.c.h.b16 %v275
      %v300 = vpack.c.b16 %v290, %v288
      %v301 = vpack.c.b16 %v291, %v289
      %v302 = vpack.c.b16 %v294, %v292
      %v303 = vpack.c.b16 %v295, %v293
      %v304 = vpack.c.b16 %v298, %v296
      %v305 = vpack.c.b16 %v299, %v297
      %vm312 = vcmask 392192
      %v314 = vsel %vm312, %v269, 0
      %316 = vmatprep.subr.bf16.mxu0 %v301
      %317 = vmatpush1.bf16.msra.mxu0 %v300
      %318 = vmatprep.subr.bf16.mxu0 %v303
      %319 = vmatpush1.bf16.msra.mxu0 %v302
      %320 = vmatprep.subr.bf16.mxu0 %v305
      %321 = vmatpush1.bf16.msra.mxu0 %v304
      %322 = vmatprep.subr.bf16.mxu0 0
      %323 = vmatpush1.bf16.msra.mxu0 0
      %324 = vmatprep.subr.bf16.mxu0 0
      %325 = vmatpush1.bf16.msra.mxu0 0
      %326 = vmatprep.subr.bf16.mxu0 0
      %327 = vmatpush1.bf16.msra.mxu0 0
      %328 = vmatprep.subr.bf16.mxu0 0
      %329 = vmatpush1.bf16.msra.mxu0 0
      %330 = vmatprep.subr.bf16.mxu0 0
      %331 = vmatpush1.bf16.msra.mxu0 0
      %332 = vmatprep.subr.bf16.mxu0 0
      %333 = vmatpush1.bf16.msra.mxu0 0
      %334 = vmatprep.subr.bf16.mxu0 0
      %335 = vmatpush1.bf16.msra.mxu0 0
      %336 = vmatprep.subr.bf16.mxu0 0
      %337 = vmatpush1.bf16.msra.mxu0 0
      %338 = vmatprep.subr.bf16.mxu0 0
      %339 = vmatpush1.bf16.msra.mxu0 0
      %340 = vmatprep.subr.bf16.mxu0 0
      %341 = vmatpush1.bf16.msra.mxu0 0
      %342 = vmatprep.subr.bf16.mxu0 0
      %343 = vmatpush1.bf16.msra.mxu0 0
      %344 = vmatprep.subr.bf16.mxu0 0
      %345 = vmatpush1.bf16.msra.mxu0 0
      %346 = vmatprep.subr.bf16.mxu0 0
      %347 = vmatpush1.bf16.msra.mxu0 0
      %348 = vmatprep.mubr.bf16.mxu0 0
      %349 = vmatmul.mubr.bf16.gmra.mrb[0].mxu0 %v314
      %v350 = vpop.f32.mrb[0].mxu0
      %v351 = vadd.f32 %v280, %v350
      %v352 = vpop.f32.mrb[0].mxu0
      %v353 = vadd.f32 %v280, %v352
      %v354 = vpop.f32.mrb[0].mxu0
      %v355 = vpop.f32.mrb[0].mxu0
      %356 = vdwg.mxu0
      %v357 = vmax.f32 %v351, 0.0
      %v358 = vmax.f32 %v353, 0.0
      %359 = vst [vmem:[%s257] sm:$0xff] %v357
      %360 = vst [vmem:[%s257 + $0x8] sm:$0xff] %v358
      %p361 = scmp.ne.s32.totalorder %s22, 0
      // Predicated region
      $region37: #{conv_block_forward.2} parent=31 // pred_check
        %p362 = pneg %p361
      $region38: #{conv_block_forward.2} parent=31 // pred_check_branch
        %364 = sbr.rel (%p362) target = $region40
      $region39: #{conv_block_forward.2} parent=31 // pred_region
        %v365 = vld [vmem:[#allocation2] sm:$0xff]
        %v366 = vadd.f32 %v357, %v358
        %367 = vadd.xlane.f32.xlu0 %v366
        %v368 = vpop.xlane.xlu0 %367
        %v369 = vadd.f32 %v365, %v368
        %vm370 = vcmask 7168
        %371 = vst.msk [vmem:[#allocation2] sm:$0xff] %vm370, %v369
        %v372 = vld [vmem:[#allocation3] sm:$0xff]
        %v373 = vmul.f32 %v357, %v357
        %v374 = vmul.f32 %v358, %v358
        %v375 = vadd.f32 %v373, %v374
        %376 = vadd.xlane.f32.xlu0 %v375
        %v377 = vpop.xlane.xlu0 %376
        %v378 = vadd.f32 %v372, %v377
        %379 = vst.msk [vmem:[#allocation3] sm:$0xff] %vm370, %v378
      $region40: #{conv_block_forward.2} parent=31 // pred_fallthru
        _
      // Predicated region
      $region41: #{conv_block_forward.2} parent=31 // pred_check
        %p380 = pneg %p261
      $region42: #{conv_block_forward.2} parent=31 // pred_check_branch
        %382 = sbr.rel (%p380) target = $region44
      $region43: #{conv_block_forward.2} parent=31 // pred_region
        %v383 = vlaneseq
        %v384 = vand.u32 %v383, 127
        %v385 = vadd.s32 %v384, 128
        %s386 = smul.u32 %s22, 256
        %v387 = vstv %s386
        %v388 = vadd.s32 %v387, %v384
        %v389 = vadd.s32 %v387, %v385
        %vm390 = vcmp.lt.s32.totalorder %v388, 256
        %vm391 = vcmp.lt.s32.totalorder %v389, 256
        %v392 = vsel %vm390, %v357, 0.0
        %v393 = vsel %vm391, %v358, 0.0
        %v394 = vld [vmem:[#allocation2] sm:$0xff]
        %v395 = vadd.f32 %v392, %v393
        %396 = vadd.xlane.f32.xlu0 %v395
        %v397 = vpop.xlane.xlu0 %396
        %v398 = vadd.f32 %v394, %v397
        %vm399 = vcmask 7168
        %400 = vst.msk [vmem:[#allocation2] sm:$0xff] %vm399, %v398
        %v401 = vld [vmem:[#allocation3] sm:$0xff]
        %v402 = vmul.f32 %v392, %v392
        %v403 = vmul.f32 %v393, %v393
        %v404 = vadd.f32 %v402, %v403
        %405 = vadd.xlane.f32.xlu0 %v404
        %v406 = vpop.xlane.xlu0 %405
        %v407 = vadd.f32 %v401, %v406
        %408 = vst.msk [vmem:[#allocation3] sm:$0xff] %vm399, %v407
      $region44: #{conv_block_forward.2} parent=31 // pred_fallthru
        _
      %p409 = scmp.eq.s32.totalorder %s21, 1
      %p410 = pnand %p409, %p261
      %p411 = pneg %p410
      // Predicated region
      $region45: #{conv_block_forward.2} parent=31 // pred_check
        _
      $region46: #{conv_block_forward.2} parent=31 // pred_check_branch
        %413 = sbr.rel (%p410) target = $region48
      $region47: #{conv_block_forward.2} parent=31 // pred_region
        %v414 = vld [vmem:[#allocation2] sm:$0xff]
        %vm415 = vcmask 7168
        %416 = vst.msk [vmem:[%s4] sm:$0xff] %vm415, %v414
        %v417 = vld [vmem:[#allocation3] sm:$0xff]
        %418 = vst.msk [vmem:[%s5] sm:$0xff] %vm415, %v417
      $region48: #{conv_block_forward.2} parent=31 // pred_fallthru
        _
      %s419 = smul.u32 2, %s22
      %p420 = scmp.lt.s32.totalorder %s21, 1
      %s421 = scalar_select %p420, %s21, 1
      %p422 = scmp.lt.s32.totalorder %s419, 1
      %s423 = scalar_select %p422, %s419, 1
      %s424 = smul.addr %s421, 2
      %s425 = sadd.s32 %s423, %s424
      %s426 = smul.addr %s425, 8
      %s427 = scalar_lea.vmem %s3, %s426
      // Predicated region
      $region49: #{conv_block_forward.2} parent=31 // pred_check
        %p428 = pneg %p119
      $region50: #{conv_block_forward.2} parent=31 // pred_check_branch
        %430 = sbr.rel (%p428) target = $region52
      $region51: #{conv_block_forward.2} parent=31 // pred_region
        %s431 = smul.u32 2, %s22
      $region52: #{conv_block_forward.2} parent=31 // pred_fallthru
        _
      // Predicated region
      $region53: #{conv_block_forward.2} parent=31 // pred_check
        %p432 = pneg %p140
      $region54: #{conv_block_forward.2} parent=31 // pred_check_branch
        %434 = sbr.rel (%p432) target = $region56
      $region55: #{conv_block_forward.2} parent=31 // pred_region
        _
      $region56: #{conv_block_forward.2} parent=31 // pred_fallthru
        _
      // Predicated region
      $region57: #{conv_block_forward.2} parent=31 // pred_check
        %p435 = pneg %p161
      $region58: #{conv_block_forward.2} parent=31 // pred_check_branch
        %437 = sbr.rel (%p435) target = $region60
      $region59: #{conv_block_forward.2} parent=31 // pred_region
        _
      $region60: #{conv_block_forward.2} parent=31 // pred_fallthru
        _
      // Predicated region
      $region61: #{conv_block_forward.2} parent=31 // pred_check
        %p438 = pneg %p140
      $region62: #{conv_block_forward.2} parent=31 // pred_check_branch
        %440 = sbr.rel (%p438) target = $region64
      $region63: #{conv_block_forward.2} parent=31 // pred_region
        _
      $region64: #{conv_block_forward.2} parent=31 // pred_fallthru
        _
      // Predicated region
      $region65: #{conv_block_forward.2} parent=31 // pred_check
        %p441 = pneg %p161
      $region66: #{conv_block_forward.2} parent=31 // pred_check_branch
        %443 = sbr.rel (%p441) target = $region68
      $region67: #{conv_block_forward.2} parent=31 // pred_region
        _
      $region68: #{conv_block_forward.2} parent=31 // pred_fallthru
        _
    $region32: #{conv_block_forward.2} parent=5 // pred_fallthru
      _
    %p444 = scmp.le.s32.totalorder 2, %s12
    // Predicated region
    $region69: #{conv_block_forward.2} parent=5 // pred_check
      %p445 = pneg %p444
    $region70: #{conv_block_forward.2} parent=5 // pred_check_branch
      %447 = sbr.rel (%p445) target = $region72
    $region71: #{conv_block_forward.2} parent=5 // pred_region
      %s448 = ssub.s32 %s12, 2
      // Predicated region
      $region73: #{conv_block_forward.2} parent=71 // pred_check
        %p449 = pneg %p125
      $region74: #{conv_block_forward.2} parent=71 // pred_check_branch
        %451 = sbr.rel (%p449) target = $region76
      $region75: #{conv_block_forward.2} parent=71 // pred_region
        %s452 = smul.u32 2, %s24
        %p453 = scmp.lt.s32.totalorder %s23, 1
        %s454 = scalar_select %p453, %s23, 1
        %p455 = scmp.lt.s32.totalorder %s452, 1
        %s456 = scalar_select %p455, %s452, 1
        %s457 = smul.addr %s454, 2
        %s458 = sadd.s32 %s456, %s457
        %s459 = smul.addr %s458, 8
        %s460 = scalar_lea.vmem %s3, %s459
      $region76: #{conv_block_forward.2} parent=71 // pred_fallthru
        _
    $region72: #{conv_block_forward.2} parent=5 // pred_fallthru
      _
  $region6: #{conv_block_forward.2} parent=0 // loop_footer
    %s16 = sadd.s32 1, %s12
  $region7: #{conv_block_forward.2} parent=0 // loop_footer_branch
    %11 = sbr.rel target = $region3
  $region8: #{conv_block_forward.2} parent=0 // loop_exit
    _

</llo_original>
